<compile_context>
chip_gen: v7x
topology: tpu7x:2x2x1
jax: 0.10.0
libtpu: 0.0.40
codegen_flags: <defaults>
</compile_context>

<pallas_src>
import math

import jax
import jax.numpy as jnp
from jax import lax
from jax.experimental import pallas as pl
from jax.experimental.pallas import tpu as pltpu

_MIB = 1024 * 1024


def _cdiv(a, b):
    return -(-a // b)


def _round_up(x, m):
    return _cdiv(x, m) * m


# ---------------------------------------------------------------------------
# Kernels
# ---------------------------------------------------------------------------
def _mm_relu_single_k_kernel(x_ref, w_ref, o_ref):
    """Whole K in one block (incl. the weight-resident path): out = relu(x @ w)."""
    o_ref[...] = jnp.maximum(
        jnp.dot(x_ref[...], w_ref[...], preferred_element_type=jnp.float32), 0.0
    ).astype(o_ref.dtype)


def _make_multi_k_kernel(k_valid_last, tk, use_scratch):
    """Multi K-step accumulating kernel (reduction axis last in the grid).

    If the last K block sticks out past the true K (k_valid_last < tk), the tail of BOTH
    tiles is masked to zero in-kernel: values read out of bounds of a partial block are
    unspecified (possibly non-finite), and 0 * garbage would still poison the reduction,
    so both operands are zeroed there.  Masking is compiled in only when actually needed.
    """
    mask_tail = k_valid_last < tk

    def kernel(x_ref, w_ref, o_ref, *scratch):
        acc_ref = scratch[0] if use_scratch else o_ref
        k = pl.program_id(2)

        @pl.when(k == 0)
        def _():
            acc_ref[...] = jnp.zeros_like(acc_ref)

        a = x_ref[...]
        w = w_ref[...]
        if mask_tail:
            lim = jnp.where(k == pl.num_programs(2) - 1, k_valid_last, tk)
            a_col = lax.broadcasted_iota(jnp.int32, a.shape, 1)
            w_row = lax.broadcasted_iota(jnp.int32, w.shape, 0)
            a = jnp.where(a_col < lim, a, jnp.zeros_like(a))
            w = jnp.where(w_row < lim, w, jnp.zeros_like(w))

        acc_ref[...] += jnp.dot(a, w, preferred_element_type=jnp.float32)

        @pl.when(k == pl.num_programs(2) - 1)
        def _():
            o_ref[...] = jnp.maximum(acc_ref[...], 0.0).astype(o_ref.dtype)

    return kernel


# ---------------------------------------------------------------------------
# Planning helpers
# ---------------------------------------------------------------------------
def _hw_info():
    """(working-set budget, scoped-vmem-limit cap, multi-TensorCore?) for this chip."""
    cap = 64 * _MIB
    try:
        cap = int(getattr(pltpu.get_tpu_info(), "vmem_capacity_bytes", cap)) or cap
    except Exception:
        pass
    multi_tc = False
    try:
        kind = jax.devices()[0].device_kind.lower()
        multi_tc = ("v7" in kind) or ("7x" in kind)
    except Exception:
        pass
    if cap >= 100 * _MIB:                     # v5e / v6e: 128 MiB physical VMEM
        return 88 * _MIB, 104 * _MIB, multi_tc
    return 26 * _MIB, 44 * _MIB, multi_tc     # v7x: 64 MiB per TensorCore -> keep headroom


def _pick_tile(dim, align, pref, user=None, min_blocks=1):
    """Largest align-multiple tile <= ~pref that covers `dim` in cdiv blocks."""
    if user is not None:
        t = _round_up(max(int(user), align), align)
    else:
        aligned = _round_up(dim, align)
        blocks = max(min_blocks, _cdiv(aligned, pref))
        blocks = min(blocks, max(1, aligned // align))
        t = _round_up(_cdiv(aligned, blocks), align)
    return t, _cdiv(dim, t)


# ---------------------------------------------------------------------------
# Wrapper
# ---------------------------------------------------------------------------
def simple_encoder_forward(features, weight, *, tm=None, tn=None, tk=None,
                           use_pallas=None, weight_resident=None):
    """relu(features @ weight) — Pallas TPU version of simple_encoder.forward."""
    M, K = features.shape
    K2, N = weight.shape
    assert K == K2, "in_features mismatch"
    out_dtype = features.dtype

    # Tiny problems: one grid step of launch/DMA overhead dominates — use XLA's fused path.
    if use_pallas is None:
        use_pallas = (M * N * K) >= (1 << 21)
    if not use_pallas:
        return jnp.maximum(features @ weight, 0.0).astype(out_dtype)

    x_it = jnp.dtype(features.dtype).itemsize
    w_it = jnp.dtype(weight.dtype).itemsize
    o_it = jnp.dtype(out_dtype).itemsize
    sublane = max(8, 32 // x_it)              # 8 for f32, 16 for bf16

    ws_budget, limit_cap, multi_tc = _hw_info()

    def ws_bytes(tm_, tn_, tk_, extra_acc):
        # double-buffered A/W/O blocks + f32 matmul intermediate (+ f32 scratch accumulator)
        return (2 * (tm_ * tk_ * x_it + tk_ * tn_ * w_it + tm_ * tn_ * o_it)
                + tm_ * tn_ * 4 + (tm_ * tn_ * 4 if extra_acc else 0))

    plan = None

    # ---- Weight-resident fast path: full weight lives in VMEM, fetched once -------------
    if weight_resident is not False and tn is None and tk is None:
        minb = 2 if (multi_tc and M >= 2 * sublane) else 1   # split M only on dual-TC chips
        tm_r, _ = _pick_tile(M, sublane, 1024, user=tm, min_blocks=minb)
        floor_m = max(sublane, min(tm_r, 128))
        while ws_bytes(tm_r, N, K, False) > ws_budget and tm_r > floor_m:
            tm_r = max(floor_m, _round_up(tm_r // 2, sublane))
        if ws_bytes(tm_r, N, K, False) <= ws_budget:
            plan = dict(tm=tm_r, tn=N, tk=K, gm=_cdiv(M, tm_r), gn=1, gk=1, scratch=False)

    # ---- General tiled path --------------------------------------------------------------
    if plan is None:
        tn_, gn = _pick_tile(N, 128, 1024, user=tn)
        tk_, gk = _pick_tile(K, 128, 512, user=tk)
        if gn == 1:
            tn_ = N                            # full-dim block: legal, no wasted lanes
        if gk == 1:
            tk_ = K                            # full-dim block: no K-tail masking needed
        minb = 2 if (multi_tc and gn == 1 and M >= 2 * sublane) else 1
        tm_, gm = _pick_tile(M, sublane, 1024, user=tm, min_blocks=minb)

        need_acc = jnp.dtype(out_dtype) != jnp.float32
        for _ in range(24):                    # clamp (possibly user-supplied) tiles to VMEM
            if ws_bytes(tm_, tn_, tk_, need_acc) <= ws_budget:
                break
            contrib = {
                "tm": 2 * tm_ * tk_ * x_it + 2 * tm_ * tn_ * o_it,
                "tn": 2 * tk_ * tn_ * w_it + 2 * tm_ * tn_ * o_it,
                "tk": 2 * tm_ * tk_ * x_it + 2 * tk_ * tn_ * w_it,
            }
            cur = {"tm": tm_, "tn": tn_, "tk": tk_}
            floors = {"tm": sublane, "tn": 128, "tk": 128}
            cand = [d for d in ("tm", "tn", "tk") if cur[d] > floors[d]]
            if not cand:
                break
            d = max(cand, key=lambda q: contrib[q])
            if d == "tm":
                tm_ = max(sublane, _round_up(tm_ // 2, sublane))
            elif d == "tn":
                tn_ = max(128, _round_up(tn_ // 2, 128))
            else:
                tk_ = max(128, _round_up(tk_ // 2, 128))
        gm, gn, gk = _cdiv(M, tm_), _cdiv(N, tn_), _cdiv(K, tk_)
        plan = dict(tm=tm_, tn=tn_, tk=tk_, gm=gm, gn=gn, gk=gk,
                    scratch=(gk > 1 and need_acc))

    tm_, tn_, tk_ = plan["tm"], plan["tn"], plan["tk"]
    gm, gn, gk = plan["gm"], plan["gn"], plan["gk"]

    cost = pl.CostEstimate(
        flops=2 * M * N * K,
        transcendentals=0,
        bytes_accessed=M * K * x_it + K * N * w_it + M * N * o_it,
    )

    if gk == 1:
        kernel = _mm_relu_single_k_kernel
        grid = (gm, gn)
        in_specs = [
            pl.BlockSpec((tm_, tk_), lambda i, j: (i, 0)),
            pl.BlockSpec((tk_, tn_), lambda i, j: (0, j)),   # gn==1 -> constant -> resident
        ]
        out_specs = pl.BlockSpec((tm_, tn_), lambda i, j: (i, j))
        scratch_shapes = []
        dims = ("parallel", "parallel")
    else:
        k_valid_last = K - (gk - 1) * tk_
        kernel = _make_multi_k_kernel(k_valid_last, tk_, plan["scratch"])
        grid = (gm, gn, gk)                     # reduction axis last
        in_specs = [
            pl.BlockSpec((tm_, tk_), lambda i, j, k: (i, k)),
            pl.BlockSpec((tk_, tn_), lambda i, j, k: (k, j)),
        ]
        out_specs = pl.BlockSpec((tm_, tn_), lambda i, j, k: (i, j))
        scratch_shapes = ([pltpu.VMEM((tm_, tn_), jnp.float32)] if plan["scratch"] else [])
        dims = ("parallel", "parallel", "arbitrary")

    ws = ws_bytes(tm_, tn_, tk_, plan["scratch"])
    vmem_limit = int(min(limit_cap, max(32 * _MIB, ws + 12 * _MIB)))

    return pl.pallas_call(
        kernel,
        out_shape=jax.ShapeDtypeStruct((M, N), out_dtype),
        grid_spec=pltpu.PrefetchScalarGridSpec(
            num_scalar_prefetch=0,
            grid=grid,
            in_specs=in_specs,
            out_specs=out_specs,
            scratch_shapes=scratch_shapes,
        ),
        compiler_params=pltpu.CompilerParams(
            dimension_semantics=dims,
            vmem_limit_bytes=vmem_limit,
        ),
        cost_estimate=cost,
    )(features, weight)


def xavier_uniform(key, in_features, out_features, dtype=jnp.float32):
    """Matches torch.nn.init.xavier_uniform_ on a (in_features, out_features) tensor."""
    bound = math.sqrt(6.0 / (in_features + out_features))
    w = jax.random.uniform(
        key, (in_features, out_features), dtype=jnp.float32, minval=-bound, maxval=bound
    )
    return w.astype(dtype)


if __name__ == "__main__":
    key = jax.random.PRNGKey(0)

    def ref(x, w):
        return jnp.maximum(x.astype(jnp.float32) @ w.astype(jnp.float32), 0.0)

    # 1) Module-default small shape (batch=8, in=32, out=32): auto path -> fused XLA fallback.
    k1, k2, key = jax.random.split(key, 3)
    x_small = jax.random.normal(k1, (8, 32), dtype=jnp.float32)
    w_small = xavier_uniform(k2, 32, 32)
    out1 = jax.block_until_ready(simple_encoder_forward(x_small, w_small))
    assert out1.shape == (8, 32)
    assert jnp.allclose(out1, ref(x_small, w_small), atol=1e-5, rtol=1e-5)

    # 2) Same small shape forced through Pallas (full-dim blocks, weight resident, no padding).
    out2 = jax.block_until_ready(simple_encoder_forward(x_small, w_small, use_pallas=True))
    assert out2.shape == (8, 32)
    assert jnp.allclose(out2, ref(x_small, w_small), atol=1e-2, rtol=1e-2)

    # 3) Weight-resident fast path (single K block, relu(dot) written directly).
    k1, k2, key = jax.random.split(key, 3)
    x3 = jax.random.normal(k1, (256, 512), dtype=jnp.float32)
    w3 = xavier_uniform(k2, 512, 384)
    out3 = jax.block_until_ready(simple_encoder_forward(x3, w3))
    assert out3.shape == (256, 384)
    assert jnp.allclose(out3, ref(x3, w3), atol=1e-2, rtol=1e-2)

    # 4) Weight-resident path with M not a multiple of the tile / sublane and N not a
    #    multiple of 128 (partial M output blocks; garbage rows/cols never stored).
    k1, k2, key = jax.random.split(key, 3)
    x4 = jax.random.normal(k1, (1100, 256), dtype=jnp.float32)
    w4 = xavier_uniform(k2, 256, 320)
    out4 = jax.block_until_ready(simple_encoder_forward(x4, w4))
    assert out4.shape == (1100, 320)
    assert jnp.allclose(out4, ref(x4, w4), atol=2e-2, rtol=2e-2)

    # 5) Tiled multi-K f32 path with a partial last K block (in-kernel tail masking),
    #    accumulating directly into the resident output block.
    k1, k2, key = jax.random.split(key, 3)
    x5 = jax.random.normal(k1, (192, 1920), dtype=jnp.float32)
    w5 = xavier_uniform(k2, 1920, 384)
    out5 = jax.block_until_ready(simple_encoder_forward(x5, w5, weight_resident=False))
    assert out5.shape == (192, 384)
    assert jnp.allclose(out5, ref(x5, w5), atol=2e-2, rtol=2e-2)

    # 6) bf16 end-to-end, explicit user tk, multi-K with f32 scratch accumulator.
    k1, k2, key = jax.random.split(key, 3)
    x6 = jax.random.normal(k1, (64, 1024), dtype=jnp.bfloat16)
    w6 = xavier_uniform(k2, 1024, 256, dtype=jnp.bfloat16)
    out6 = jax.block_until_ready(
        simple_encoder_forward(x6, w6, tk=256, weight_resident=False)
    )
    assert out6.shape == (64, 256) and out6.dtype == jnp.bfloat16
    assert jnp.allclose(out6.astype(jnp.float32), ref(x6, w6), atol=5e-2, rtol=5e-2)

    print("KERNEL_OK")
</pallas_src>

<mosaic_0001>
module attributes {stable_mosaic.version = 11 : i64} {
  func.func @_mm_relu_single_k_kernel(%arg0: i32, %arg1: i32, %arg2: memref<8x32xf32, #tpu.memory_space<vmem>>, %arg3: memref<32x32xf32, #tpu.memory_space<vmem>>, %arg4: memref<8x32xf32, #tpu.memory_space<vmem>>) attributes {dimension_semantics = [#tpu.dimension_semantics<parallel>, #tpu.dimension_semantics<parallel>], iteration_bounds = array<i64: 1, 1>, scalar_prefetch = 0 : i64, scratch_operands = 0 : i64, tpu.core_type = #tpu.core_type<tc>, window_params = [{transform_indices = @transform_0, window_bounds = array<i64: 8, 32>}, {transform_indices = @transform_1, window_bounds = array<i64: 32, 32>}, {transform_indices = @transform_2, window_bounds = array<i64: 8, 32>}]} {
    %c0 = arith.constant 0 : index
    %c0_0 = arith.constant 0 : index
    %0 = vector.load %arg2[%c0, %c0_0] : memref<8x32xf32, #tpu.memory_space<vmem>>, vector<8x32xf32>
    %c0_1 = arith.constant 0 : index
    %c0_2 = arith.constant 0 : index
    %1 = vector.load %arg3[%c0_1, %c0_2] : memref<32x32xf32, #tpu.memory_space<vmem>>, vector<32x32xf32>
    %cst = arith.constant dense<0.000000e+00> : vector<8x32xf32>
    %2 = tpu.matmul %0, %1, %cst {dimension_numbers = #tpu.dot_dimension_numbers<[1], [0], [0], [1], [0, 0, 1, 1], [], []>} : vector<8x32xf32>, vector<32x32xf32>, vector<8x32xf32> -> vector<8x32xf32>
    %cst_3 = arith.constant 0.000000e+00 : f32
    %3 = vector.broadcast %cst_3 : f32 to vector<8x32xf32>
    %4 = arith.maximumf %2, %3 : vector<8x32xf32>
    %c0_4 = arith.constant 0 : index
    %c0_5 = arith.constant 0 : index
    %5 = vector.load %arg4[%c0_4, %c0_5] : memref<8x32xf32, #tpu.memory_space<vmem>>, vector<8x32xf32>
    tpu.vector_store %arg4[%c0_4, %c0_5], %4 {strides = array<i32>} : memref<8x32xf32, #tpu.memory_space<vmem>>, vector<8x32xf32>,
    return
  }
  func.func @transform_0(%arg0: i32, %arg1: i32) -> (i32, i32) {
    %c0_i32 = arith.constant 0 : i32
    %c0_i32_0 = arith.constant 0 : i32
    return %arg0, %c0_i32 : i32, i32
  }
  func.func @transform_1(%arg0: i32, %arg1: i32) -> (i32, i32) {
    %c0_i32 = arith.constant 0 : i32
    %c0_i32_0 = arith.constant 0 : i32
    return %c0_i32, %arg1 : i32, i32
  }
  func.func @transform_2(%arg0: i32, %arg1: i32) -> (i32, i32) {
    %c0_i32 = arith.constant 0 : i32
    return %arg0, %arg1 : i32, i32
  }
}

</mosaic_0001>

<llo_original>
// kernel: tpu_custom_call.1
$region0: #{tpu_custom_call.1}
  #allocation0 [shape = 'u32[]', space=smem, size = 0x4, offset = 0x4, fixed_abs, tag = 'smem constant byte address 0x4 - core index']
  #allocation1 [shape = 'u32[144,128]{1,0:T(1,128)}', space=vmem, size = 0x12000, scoped, tag = 'internal scratch']
  %s0 = inlined_call_operand.hbm [shape: f32[8,32], index: 0, kind: input, shape index: {}]
  %s1 = inlined_call_operand.hbm [shape: f32[32,32], index: 1, kind: input, shape index: {}]
  %s2 = inlined_call_operand.hbm [shape: f32[8,32], index: 2, kind: output, shape index: {}]
  %s3 = sld [smem:[#allocation0]]
  $region26: #{tpu_custom_call.1} parent=0
    _
  %s5 = ssub.s32 1, %s3
  %s6 = scalar_select 0, %s5, %s3
  $region1: #{tpu_custom_call.1} parent=0
    #allocation2 [shape = 'u8[4096]{0}', space=vmem, size = 0x1000, scoped, tag = 'input window, operand 0, single buffered']
    #allocation3 [shape = 's32[1]{0}', space=sflag, size = 0x4, scoped, tag = 'scoped memory for tpu_custom_call.1']
    #allocation4 [shape = 's32[1]{0}', space=sflag, size = 0x4, scoped, tag = 'scoped memory for tpu_custom_call.1']
    #allocation5 [shape = 'u8[16384]{0}', space=vmem, size = 0x4000, scoped, tag = 'input window, operand 1, single buffered']
    #allocation6 [shape = 's32[1]{0}', space=sflag, size = 0x4, scoped, tag = 'scoped memory for tpu_custom_call.1']
    #allocation7 [shape = 'u8[4096]{0}', space=vmem, size = 0x1000, scoped, tag = 'output window, operand 0, single buffered']
    %7 = vsyncpa [#allocation3], 0
    %8 = vsyncpa [#allocation6], 0
    %9 = vsyncpa [#allocation4], 0
    // Predicated region
    $region2: #{tpu_custom_call.1} parent=1 // pred_check
      _
    $region3: #{tpu_custom_call.1} parent=1 // pred_check_branch
      %11 = sbr.rel (0) target = $region5
    $region4: #{tpu_custom_call.1} parent=1 // pred_region
      %s13 = ssub.s32 128, 128
      %14 = vsyncadd [#allocation3], %s13
      %s16 = sshll.u32 [#allocation2], 4
      %s17 = int_to_ptr.vmem [resolvable:$true] %s16
      %19 = dma.hbm_to_vmem [thread:$0]  %s0, 128, %s17, [#allocation3]
    $region5: #{tpu_custom_call.1} parent=1 // pred_fallthru
      _
    // Predicated region
    $region6: #{tpu_custom_call.1} parent=1 // pred_check
      _
    $region7: #{tpu_custom_call.1} parent=1 // pred_check_branch
      %21 = sbr.rel (0) target = $region9
    $region8: #{tpu_custom_call.1} parent=1 // pred_region
      %s23 = ssub.s32 512, 512
      %24 = vsyncadd [#allocation6], %s23
      %s25 = sshll.u32 [#allocation5], 4
      %s26 = int_to_ptr.vmem [resolvable:$true] %s25
      %31 = dma.hbm_to_vmem [thread:$0]  %s1, 512, %s26, [#allocation6], 128, 128, 8
    $region9: #{tpu_custom_call.1} parent=1 // pred_fallthru
      _
    // Predicated region
    $region10: #{tpu_custom_call.1} parent=1 // pred_check
      _
    $region11: #{tpu_custom_call.1} parent=1 // pred_check_branch
      %33 = sbr.rel (0) target = $region13
    $region12: #{tpu_custom_call.1} parent=1 // pred_region
      %34 = dma.done [#allocation3], 128
    $region13: #{tpu_custom_call.1} parent=1 // pred_fallthru
      _
    // Predicated region
    $region14: #{tpu_custom_call.1} parent=1 // pred_check
      _
    $region15: #{tpu_custom_call.1} parent=1 // pred_check_branch
      %36 = sbr.rel (0) target = $region17
    $region16: #{tpu_custom_call.1} parent=1 // pred_region
      %37 = dma.done [#allocation6], 512
    $region17: #{tpu_custom_call.1} parent=1 // pred_fallthru
      _
    %v38 = vld [vmem:[#allocation2] sm:$0xff]
    %v39 = vld [vmem:[#allocation5] sm:$0xff]
    %v40 = vld [vmem:[#allocation5 + $0x8] sm:$0xff]
    %v41 = vld [vmem:[#allocation5 + $0x10] sm:$0xff]
    %v42 = vld [vmem:[#allocation5 + $0x18] sm:$0xff]
    %vm43 = vcmask 261120
    %v45 = vsel %vm43, %v38, 0
    %47 = vmatprep.subr.mxu0 0.0
    %48 = vmatpush1.msra.mxu0 %v39
    %49 = vmatprep.subr.mxu0 0.0
    %50 = vmatpush1.msra.mxu0 %v40
    %51 = vmatprep.subr.mxu0 0.0
    %52 = vmatpush1.msra.mxu0 %v41
    %53 = vmatprep.subr.mxu0 0.0
    %54 = vmatpush1.msra.mxu0 %v42
    %55 = vmatprep.subr.mxu0 0.0
    %56 = vmatpush1.msra.mxu0 0.0
    %57 = vmatprep.subr.mxu0 0.0
    %58 = vmatpush1.msra.mxu0 0.0
    %59 = vmatprep.subr.mxu0 0.0
    %60 = vmatpush1.msra.mxu0 0.0
    %61 = vmatprep.subr.mxu0 0.0
    %62 = vmatpush1.msra.mxu0 0.0
    %63 = vmatprep.subr.mxu0 0.0
    %64 = vmatpush1.msra.mxu0 0.0
    %65 = vmatprep.subr.mxu0 0.0
    %66 = vmatpush1.msra.mxu0 0.0
    %67 = vmatprep.subr.mxu0 0.0
    %68 = vmatpush1.msra.mxu0 0.0
    %69 = vmatprep.subr.mxu0 0.0
    %70 = vmatpush1.msra.mxu0 0.0
    %71 = vmatprep.subr.mxu0 0.0
    %72 = vmatpush1.msra.mxu0 0.0
    %73 = vmatprep.subr.mxu0 0.0
    %74 = vmatpush1.msra.mxu0 0.0
    %75 = vmatprep.subr.mxu0 0.0
    %76 = vmatpush1.msra.mxu0 0.0
    %77 = vmatprep.subr.mxu0 0.0
    %78 = vmatpush1.msra.mxu0 0.0
    %79 = vmatprep.subr.mxu0 0.0
    %80 = vmatpush1.msra.mxu0 0.0
    %81 = vmatprep.subr.mxu0 0.0
    %82 = vmatpush1.msra.mxu0 0.0
    %83 = vmatprep.subr.mxu0 0.0
    %84 = vmatpush1.msra.mxu0 0.0
    %85 = vmatprep.subr.mxu0 0.0
    %86 = vmatpush1.msra.mxu0 0.0
    %87 = vmatprep.subr.mxu0 0.0
    %88 = vmatpush1.msra.mxu0 0.0
    %89 = vmatprep.subr.mxu0 0.0
    %90 = vmatpush1.msra.mxu0 0.0
    %91 = vmatprep.subr.mxu0 0.0
    %92 = vmatpush1.msra.mxu0 0.0
    %93 = vmatprep.subr.mxu0 0.0
    %94 = vmatpush1.msra.mxu0 0.0
    %95 = vmatprep.subr.mxu0 0.0
    %96 = vmatpush1.msra.mxu0 0.0
    %97 = vmatprep.subr.mxu0 0.0
    %98 = vmatpush1.msra.mxu0 0.0
    %99 = vmatprep.subr.mxu0 0.0
    %100 = vmatpush1.msra.mxu0 0.0
    %101 = vmatprep.subr.mxu0 0.0
    %102 = vmatpush1.msra.mxu0 0.0
    %103 = vmatprep.subr.mxu0 0.0
    %104 = vmatpush1.msra.mxu0 0.0
    %105 = vmatprep.subr.mxu0 0.0
    %106 = vmatpush1.msra.mxu0 0.0
    %107 = vmatprep.subr.mxu0 0.0
    %108 = vmatpush1.msra.mxu0 0.0
    %109 = vmatprep.subr.mxu0 0.0
    %110 = vmatpush1.msra.mxu0 0.0
    %111 = vmatprep.mubr.f32.mxu0 0.0
    %112 = vmatmul.mubr.f32.gmra.mrb[0].mxu0 %v45
    %v113 = vpop.f32.mrb[0].mxu0
    %v114 = vadd.f32 0.0, %v113
    %v115 = vpop.f32.mrb[0].mxu0
    %116 = vdwg.mxu0
    %v117 = vmax.f32 %v114, 0.0
    %118 = vst.msk [vmem:[#allocation7] sm:$0xff] %vm43, %v117
    // Predicated region
    $region18: #{tpu_custom_call.1} parent=1 // pred_check
      _
    $region19: #{tpu_custom_call.1} parent=1 // pred_check_branch
      %120 = sbr.rel (0) target = $region21
    $region20: #{tpu_custom_call.1} parent=1 // pred_region
      %s122 = ssub.s32 128, 128
      %123 = vsyncadd [#allocation4], %s122
      %s125 = sshll.u32 [#allocation7], 4
      %s126 = int_to_ptr.vmem [resolvable:$true] %s125
      %128 = dma.vmem_to_hbm [thread:$0]  %s126, 128, %s2, [#allocation4]
    $region21: #{tpu_custom_call.1} parent=1 // pred_fallthru
      _
    // Predicated region
    $region22: #{tpu_custom_call.1} parent=1 // pred_check
      _
    $region23: #{tpu_custom_call.1} parent=1 // pred_check_branch
      %130 = sbr.rel (0) target = $region25
    $region24: #{tpu_custom_call.1} parent=1 // pred_region
      %131 = dma.done [#allocation4], 128
    $region25: #{tpu_custom_call.1} parent=1 // pred_fallthru
      _
    %132 = vsyncpa [#allocation3], 1
    %133 = vsyncpa [#allocation6], 1
    %134 = vsyncpa [#allocation4], 1

</llo_original>
